<compile_context>
chip_gen: v7x
topology: tpu7x:2x2x1
jax: 0.10.0
libtpu: 0.0.40
codegen_flags: <defaults>
</compile_context>

<pallas_src>
import functools
import math

import jax
import jax.numpy as jnp
from jax.experimental import pallas as pl
from jax.experimental.pallas import tpu as pltpu


# ------------------------------ Pallas kernel ------------------------------

def _mlp_kernel(x_ref, w1_ref, b1_ref, w2_ref, b2_ref, w3_ref, b3_ref,
                w4_ref, b4_ref, o_ref):
    """Fused 4-layer MLP + log-softmax for one batch-row tile."""
    # Layer 1: (TB, K) @ (K, H) + b1 -> ReLU (bf16 MXU inputs, f32 accumulate)
    x = x_ref[...].astype(jnp.bfloat16)
    h = jnp.dot(x, w1_ref[...], preferred_element_type=jnp.float32) + b1_ref[...]
    h = jnp.maximum(h, 0.0)
    # Layer 2
    h = jnp.dot(h.astype(jnp.bfloat16), w2_ref[...],
                preferred_element_type=jnp.float32) + b2_ref[...]
    h = jnp.maximum(h, 0.0)
    # Layer 3
    h = jnp.dot(h.astype(jnp.bfloat16), w3_ref[...],
                preferred_element_type=jnp.float32) + b3_ref[...]
    h = jnp.maximum(h, 0.0)
    # Classifier: output padded to 128 lanes. Padded w4 columns are zero and
    # padded b4 entries are -1e30, so no in-kernel class mask is needed; the
    # padded lanes contribute exp(-inf-ish) = 0 to the log-sum-exp.
    logits = jnp.dot(h.astype(jnp.bfloat16), w4_ref[...],
                     preferred_element_type=jnp.float32) + b4_ref[...]
    m = jnp.max(logits, axis=1, keepdims=True)
    shifted = logits - m
    lse = jnp.log(jnp.sum(jnp.exp(shifted), axis=1, keepdims=True))
    o_ref[...] = (shifted - lse).astype(o_ref.dtype)


# ------------------------------- JAX wrapper --------------------------------

def _round_up(a, b):
    return (a + b - 1) // b * b


def mlp_forward(params, x, *, n_classes, block_b=1024):
    """Forward pass matching the PyTorch MLP (eval mode). x: (B, ...)."""
    B = x.shape[0]
    x2 = x.reshape(B, -1)                  # torch.flatten(x, 1); NO dtype upcast
    K = x2.shape[1]
    H = params["w1"].shape[1]
    Np = params["w4"].shape[1]             # padded classes (128)

    # Batch tiling:
    #  * small/medium batches: one full-batch tile (block dim == array dim is
    #    always legal, no padding / alignment needed, no pad copy).
    #  * large batches: tiles of <= block_b with at least 2 grid steps so both
    #    v7x TensorCores get work; ragged last tile handled by Pallas.
    if B <= 512:
        tb = B
    else:
        tb = min(block_b, _round_up(pl.cdiv(B, 2), 8))
    grid = (pl.cdiv(B, tb),)

    x_bytes = x2.dtype.itemsize
    weight_bytes = sum(int(params[k].size) * params[k].dtype.itemsize
                       for k in ("w1", "b1", "w2", "b2", "w3", "b3", "w4", "b4"))
    flops = 2 * B * (K * H + 2 * H * H + H * Np)
    bytes_accessed = B * K * x_bytes + weight_bytes + B * Np * 4

    # Explicit scoped-VMEM budget (double-buffered x/out tiles + resident
    # weights, with headroom) so enlarged tiles are safe on v5e's 16 MiB
    # default while staying well under v7x's 64 MiB physical VMEM.
    vmem_bytes = 2 * tb * K * x_bytes + 2 * tb * Np * 4 + 2 * weight_bytes
    vmem_limit = int(min(64 << 20, max(vmem_bytes + (4 << 20), 16 << 20)))

    row = lambda i: (i, 0)    # batch-tiled operands
    rep = lambda i: (0, 0)    # VMEM-resident (replicated) operands

    out = pl.pallas_call(
        _mlp_kernel,
        out_shape=jax.ShapeDtypeStruct((B, Np), jnp.float32),
        grid=grid,
        in_specs=[
            pl.BlockSpec((tb, K), row),    # x tile (source dtype, cast in-kernel)
            pl.BlockSpec((K, H), rep),     # w1
            pl.BlockSpec((1, H), rep),     # b1
            pl.BlockSpec((H, H), rep),     # w2
            pl.BlockSpec((1, H), rep),     # b2
            pl.BlockSpec((H, H), rep),     # w3
            pl.BlockSpec((1, H), rep),     # b3
            pl.BlockSpec((H, Np), rep),    # w4 (padded to 128 lanes)
            pl.BlockSpec((1, Np), rep),    # b4 (padded lanes hold -1e30)
        ],
        out_specs=pl.BlockSpec((tb, Np), row),
        compiler_params=pltpu.CompilerParams(
            dimension_semantics=("parallel",),
            vmem_limit_bytes=vmem_limit),
        cost_estimate=pl.CostEstimate(
            flops=flops,
            transcendentals=B * Np,
            bytes_accessed=bytes_accessed),
    )(x2, params["w1"], params["b1"], params["w2"], params["b2"],
      params["w3"], params["b3"], params["w4"], params["b4"])

    return out[:, :n_classes]


def init_params(key, *, in_features, hidden, n_classes, n_pad=128):
    """PyTorch-style Linear init; weights transposed to (in, out), bf16 for MXU."""
    ks = jax.random.split(key, 8)

    def linear(kw, kb, fan_in, fan_out):
        bound = 1.0 / math.sqrt(fan_in)
        w = jax.random.uniform(kw, (fan_out, fan_in), jnp.float32, -bound, bound)
        b = jax.random.uniform(kb, (fan_out,), jnp.float32, -bound, bound)
        return jnp.transpose(w), b                      # (in, out)

    w1, b1 = linear(ks[0], ks[1], in_features, hidden)
    w2, b2 = linear(ks[2], ks[3], hidden, hidden)
    w3, b3 = linear(ks[4], ks[5], hidden, hidden)
    w4, b4 = linear(ks[6], ks[7], hidden, n_classes)

    # Pad classifier 10 -> 128 lanes: zero weight columns + -1e30 bias entries
    # (so padded logits are -1e30 and the in-kernel mask is unnecessary).
    w4 = jnp.pad(w4, ((0, 0), (0, n_pad - n_classes)))
    b4 = jnp.concatenate(
        [b4, jnp.full((n_pad - n_classes,), -1e30, jnp.float32)])

    return dict(
        w1=w1.astype(jnp.bfloat16), b1=b1.reshape(1, -1),
        w2=w2.astype(jnp.bfloat16), b2=b2.reshape(1, -1),
        w3=w3.astype(jnp.bfloat16), b3=b3.reshape(1, -1),
        w4=w4.astype(jnp.bfloat16), b4=b4.reshape(1, -1),
    )


def forward_ref(params, x, n_classes):
    """Pure-JAX reference (same bf16-quantized weights / bf16 x, f32 math)."""
    h = x.reshape(x.shape[0], -1).astype(jnp.float32)
    h = jnp.maximum(h @ params["w1"].astype(jnp.float32) + params["b1"], 0.0)
    h = jnp.maximum(h @ params["w2"].astype(jnp.float32) + params["b2"], 0.0)
    h = jnp.maximum(h @ params["w3"].astype(jnp.float32) + params["b3"], 0.0)
    logits = (h @ params["w4"].astype(jnp.float32) + params["b4"])[:, :n_classes]
    return jax.nn.log_softmax(logits, axis=1)


if __name__ == "__main__":
    hidden_size = 128           # lane-aligned hidden width
    n_classes = 10
    image_size = (28, 28)
    in_features = image_size[0] * image_size[1]   # 784

    root = jax.random.PRNGKey(0)
    pkey, xkey = jax.random.split(root)

    params = init_params(pkey, in_features=in_features,
                         hidden=hidden_size, n_classes=n_classes)
    # Data pipeline hands over bf16 pixels -> the kernel's dominant HBM stream
    # is half the width of the previous f32 version (no wrapper-side upcast).
    x = jax.random.normal(xkey, (2, 1, 28, 28), jnp.float32).astype(jnp.bfloat16)

    fwd = jax.jit(functools.partial(mlp_forward, n_classes=n_classes))
    out = jax.block_until_ready(fwd(params, x))

    assert out.shape == (2, n_classes)
    assert bool(jnp.all(jnp.isfinite(out)))
    # log-softmax rows must sum to 1 in probability space
    assert jnp.allclose(jnp.sum(jnp.exp(out), axis=1), 1.0, atol=1e-4)
    # loose check vs. pure-JAX reference (bf16 MXU inputs -> small drift)
    ref = forward_ref(params, x, n_classes)
    assert jnp.allclose(out, ref, atol=5e-2), float(jnp.max(jnp.abs(out - ref)))
    print("KERNEL_OK")
</pallas_src>

<mosaic_0001>
module attributes {stable_mosaic.version = 11 : i64} {
  func.func @_mlp_kernel(%arg0: i32, %arg1: memref<2x784xbf16, #tpu.memory_space<vmem>>, %arg2: memref<784x128xbf16, #tpu.memory_space<vmem>>, %arg3: memref<1x128xf32, #tpu.memory_space<vmem>>, %arg4: memref<128x128xbf16, #tpu.memory_space<vmem>>, %arg5: memref<1x128xf32, #tpu.memory_space<vmem>>, %arg6: memref<128x128xbf16, #tpu.memory_space<vmem>>, %arg7: memref<1x128xf32, #tpu.memory_space<vmem>>, %arg8: memref<128x128xbf16, #tpu.memory_space<vmem>>, %arg9: memref<1x128xf32, #tpu.memory_space<vmem>>, %arg10: memref<2x128xf32, #tpu.memory_space<vmem>>) attributes {dimension_semantics = [#tpu.dimension_semantics<parallel>], iteration_bounds = array<i64: 1>, scalar_prefetch = 0 : i64, scratch_operands = 0 : i64, tpu.core_type = #tpu.core_type<tc>, window_params = [{transform_indices = @transform_0, window_bounds = array<i64: 2, 784>}, {pipeline_mode = #tpu.pipeline_mode<synchronous>, transform_indices = @transform_1, window_bounds = array<i64: 784, 128>}, {pipeline_mode = #tpu.pipeline_mode<synchronous>, transform_indices = @transform_2, window_bounds = array<i64: 1, 128>}, {pipeline_mode = #tpu.pipeline_mode<synchronous>, transform_indices = @transform_3, window_bounds = array<i64: 128, 128>}, {pipeline_mode = #tpu.pipeline_mode<synchronous>, transform_indices = @transform_4, window_bounds = array<i64: 1, 128>}, {pipeline_mode = #tpu.pipeline_mode<synchronous>, transform_indices = @transform_5, window_bounds = array<i64: 128, 128>}, {pipeline_mode = #tpu.pipeline_mode<synchronous>, transform_indices = @transform_6, window_bounds = array<i64: 1, 128>}, {pipeline_mode = #tpu.pipeline_mode<synchronous>, transform_indices = @transform_7, window_bounds = array<i64: 128, 128>}, {pipeline_mode = #tpu.pipeline_mode<synchronous>, transform_indices = @transform_8, window_bounds = array<i64: 1, 128>}, {transform_indices = @transform_9, window_bounds = array<i64: 2, 128>}]} {
    %c0 = arith.constant 0 : index
    %c0_0 = arith.constant 0 : index
    %0 = vector.load %arg1[%c0, %c0_0] : memref<2x784xbf16, #tpu.memory_space<vmem>>, vector<2x784xbf16>
    %c0_1 = arith.constant 0 : index
    %c0_2 = arith.constant 0 : index
    %1 = vector.load %arg2[%c0_1, %c0_2] : memref<784x128xbf16, #tpu.memory_space<vmem>>, vector<784x128xbf16>
    %cst = arith.constant dense<0.000000e+00> : vector<2x128xf32>
    %2 = tpu.matmul %0, %1, %cst {dimension_numbers = #tpu.dot_dimension_numbers<[1], [0], [0], [1], [0, 0, 1, 1], [], []>} : vector<2x784xbf16>, vector<784x128xbf16>, vector<2x128xf32> -> vector<2x128xf32>
    %c0_3 = arith.constant 0 : index
    %c0_4 = arith.constant 0 : index
    %3 = vector.load %arg3[%c0_3, %c0_4] : memref<1x128xf32, #tpu.memory_space<vmem>>, vector<1x128xf32>
    %4 = vector.broadcast %3 : vector<1x128xf32> to vector<2x128xf32>
    %5 = arith.addf %2, %4 : vector<2x128xf32>
    %cst_5 = arith.constant 0.000000e+00 : f32
    %6 = vector.broadcast %cst_5 : f32 to vector<2x128xf32>
    %7 = arith.maximumf %5, %6 : vector<2x128xf32>
    %8 = arith.truncf %7 : vector<2x128xf32> to vector<2x128xbf16>
    %c0_6 = arith.constant 0 : index
    %c0_7 = arith.constant 0 : index
    %9 = vector.load %arg4[%c0_6, %c0_7] : memref<128x128xbf16, #tpu.memory_space<vmem>>, vector<128x128xbf16>
    %cst_8 = arith.constant dense<0.000000e+00> : vector<2x128xf32>
    %10 = tpu.matmul %8, %9, %cst_8 {dimension_numbers = #tpu.dot_dimension_numbers<[1], [0], [0], [1], [0, 0, 1, 1], [], []>} : vector<2x128xbf16>, vector<128x128xbf16>, vector<2x128xf32> -> vector<2x128xf32>
    %c0_9 = arith.constant 0 : index
    %c0_10 = arith.constant 0 : index
    %11 = vector.load %arg5[%c0_9, %c0_10] : memref<1x128xf32, #tpu.memory_space<vmem>>, vector<1x128xf32>
    %12 = vector.broadcast %11 : vector<1x128xf32> to vector<2x128xf32>
    %13 = arith.addf %10, %12 : vector<2x128xf32>
    %cst_11 = arith.constant 0.000000e+00 : f32
    %14 = vector.broadcast %cst_11 : f32 to vector<2x128xf32>
    %15 = arith.maximumf %13, %14 : vector<2x128xf32>
    %16 = arith.truncf %15 : vector<2x128xf32> to vector<2x128xbf16>
    %c0_12 = arith.constant 0 : index
    %c0_13 = arith.constant 0 : index
    %17 = vector.load %arg6[%c0_12, %c0_13] : memref<128x128xbf16, #tpu.memory_space<vmem>>, vector<128x128xbf16>
    %cst_14 = arith.constant dense<0.000000e+00> : vector<2x128xf32>
    %18 = tpu.matmul %16, %17, %cst_14 {dimension_numbers = #tpu.dot_dimension_numbers<[1], [0], [0], [1], [0, 0, 1, 1], [], []>} : vector<2x128xbf16>, vector<128x128xbf16>, vector<2x128xf32> -> vector<2x128xf32>
    %c0_15 = arith.constant 0 : index
    %c0_16 = arith.constant 0 : index
    %19 = vector.load %arg7[%c0_15, %c0_16] : memref<1x128xf32, #tpu.memory_space<vmem>>, vector<1x128xf32>
    %20 = vector.broadcast %19 : vector<1x128xf32> to vector<2x128xf32>
    %21 = arith.addf %18, %20 : vector<2x128xf32>
    %cst_17 = arith.constant 0.000000e+00 : f32
    %22 = vector.broadcast %cst_17 : f32 to vector<2x128xf32>
    %23 = arith.maximumf %21, %22 : vector<2x128xf32>
    %24 = arith.truncf %23 : vector<2x128xf32> to vector<2x128xbf16>
    %c0_18 = arith.constant 0 : index
    %c0_19 = arith.constant 0 : index
    %25 = vector.load %arg8[%c0_18, %c0_19] : memref<128x128xbf16, #tpu.memory_space<vmem>>, vector<128x128xbf16>
    %cst_20 = arith.constant dense<0.000000e+00> : vector<2x128xf32>
    %26 = tpu.matmul %24, %25, %cst_20 {dimension_numbers = #tpu.dot_dimension_numbers<[1], [0], [0], [1], [0, 0, 1, 1], [], []>} : vector<2x128xbf16>, vector<128x128xbf16>, vector<2x128xf32> -> vector<2x128xf32>
    %c0_21 = arith.constant 0 : index
    %c0_22 = arith.constant 0 : index
    %27 = vector.load %arg9[%c0_21, %c0_22] : memref<1x128xf32, #tpu.memory_space<vmem>>, vector<1x128xf32>
    %28 = vector.broadcast %27 : vector<1x128xf32> to vector<2x128xf32>
    %29 = arith.addf %26, %28 : vector<2x128xf32>
    %cst_23 = arith.constant dense<0xFF800000> : vector<2xf32>
    %30 = vector.multi_reduction <maximumf>, %29, %cst_23 [1] : vector<2x128xf32> to vector<2xf32>
    %31 = vector.shape_cast %30 : vector<2xf32> to vector<2x1xf32>
    %32 = vector.broadcast %31 : vector<2x1xf32> to vector<2x128xf32>
    %33 = arith.subf %29, %32 : vector<2x128xf32>
    %34 = math.exp %33 : vector<2x128xf32>
    %cst_24 = arith.constant dense<0.000000e+00> : vector<2xf32>
    %35 = vector.multi_reduction <add>, %34, %cst_24 [1] : vector<2x128xf32> to vector<2xf32>
    %36 = vector.shape_cast %35 : vector<2xf32> to vector<2x1xf32>
    %37 = math.log %36 : vector<2x1xf32>
    %38 = vector.broadcast %37 : vector<2x1xf32> to vector<2x128xf32>
    %39 = arith.subf %33, %38 : vector<2x128xf32>
    %c0_25 = arith.constant 0 : index
    %c0_26 = arith.constant 0 : index
    %40 = vector.load %arg10[%c0_25, %c0_26] : memref<2x128xf32, #tpu.memory_space<vmem>>, vector<2x128xf32>
    tpu.vector_store %arg10[%c0_25, %c0_26], %39 {strides = array<i32>} : memref<2x128xf32, #tpu.memory_space<vmem>>, vector<2x128xf32>,
    return
  }
  func.func @transform_0(%arg0: i32) -> (i32, i32) {
    %c0_i32 = arith.constant 0 : i32
    %c0_i32_0 = arith.constant 0 : i32
    return %arg0, %c0_i32 : i32, i32
  }
  func.func @transform_1(%arg0: i32) -> (i32, i32) {
    %c0_i32 = arith.constant 0 : i32
    %c0_i32_0 = arith.constant 0 : i32
    %c0_i32_1 = arith.constant 0 : i32
    return %c0_i32, %c0_i32_0 : i32, i32
  }
  func.func @transform_2(%arg0: i32) -> (i32, i32) {
    %c0_i32 = arith.constant 0 : i32
    %c0_i32_0 = arith.constant 0 : i32
    %c0_i32_1 = arith.constant 0 : i32
    return %c0_i32, %c0_i32_0 : i32, i32
  }
  func.func @transform_3(%arg0: i32) -> (i32, i32) {
    %c0_i32 = arith.constant 0 : i32
    %c0_i32_0 = arith.constant 0 : i32
    %c0_i32_1 = arith.constant 0 : i32
    return %c0_i32, %c0_i32_0 : i32, i32
  }
  func.func @transform_4(%arg0: i32) -> (i32, i32) {
    %c0_i32 = arith.constant 0 : i32
    %c0_i32_0 = arith.constant 0 : i32
    %c0_i32_1 = arith.constant 0 : i32
    return %c0_i32, %c0_i32_0 : i32, i32
  }
  func.func @transform_5(%arg0: i32) -> (i32, i32) {
    %c0_i32 = arith.constant 0 : i32
    %c0_i32_0 = arith.constant 0 : i32
    %c0_i32_1 = arith.constant 0 : i32
    return %c0_i32, %c0_i32_0 : i32, i32
  }
  func.func @transform_6(%arg0: i32) -> (i32, i32) {
    %c0_i32 = arith.constant 0 : i32
    %c0_i32_0 = arith.constant 0 : i32
    %c0_i32_1 = arith.constant 0 : i32
    return %c0_i32, %c0_i32_0 : i32, i32
  }
  func.func @transform_7(%arg0: i32) -> (i32, i32) {
    %c0_i32 = arith.constant 0 : i32
    %c0_i32_0 = arith.constant 0 : i32
    %c0_i32_1 = arith.constant 0 : i32
    return %c0_i32, %c0_i32_0 : i32, i32
  }
  func.func @transform_8(%arg0: i32) -> (i32, i32) {
    %c0_i32 = arith.constant 0 : i32
    %c0_i32_0 = arith.constant 0 : i32
    %c0_i32_1 = arith.constant 0 : i32
    return %c0_i32, %c0_i32_0 : i32, i32
  }
  func.func @transform_9(%arg0: i32) -> (i32, i32) {
    %c0_i32 = arith.constant 0 : i32
    %c0_i32_0 = arith.constant 0 : i32
    return %arg0, %c0_i32 : i32, i32
  }
}

</mosaic_0001>

<llo_original>
// kernel: mlp_forward.1
$region0: #{mlp_forward.1}
  #allocation0 [shape = 'u32[]', space=smem, size = 0x4, offset = 0x4, fixed_abs, tag = 'smem constant byte address 0x4 - core index']
  #allocation1 [shape = 'u32[144,128]{1,0:T(1,128)}', space=vmem, size = 0x12000, scoped, tag = 'internal scratch']
  %s0 = inlined_call_operand.vmem [shape: bf16[2,784], index: 0, kind: input, shape index: {}]
  %s1 = inlined_call_operand.hbm [shape: bf16[784,128], index: 1, kind: input, shape index: {}]
  %s2 = inlined_call_operand.vmem [shape: f32[1,128], index: 2, kind: input, shape index: {}]
  %s3 = inlined_call_operand.vmem [shape: bf16[128,128], index: 3, kind: input, shape index: {}]
  %s4 = inlined_call_operand.vmem [shape: f32[1,128], index: 4, kind: input, shape index: {}]
  %s5 = inlined_call_operand.hbm [shape: bf16[128,128], index: 5, kind: input, shape index: {}]
  %s6 = inlined_call_operand.vmem [shape: f32[1,128], index: 6, kind: input, shape index: {}]
  %s7 = inlined_call_operand.hbm [shape: bf16[128,128], index: 7, kind: input, shape index: {}]
  %s8 = inlined_call_operand.vmem [shape: f32[1,128], index: 8, kind: input, shape index: {}]
  %s9 = inlined_call_operand.hbm [shape: f32[2,128], index: 9, kind: output, shape index: {}]
  %s10 = sld [smem:[#allocation0]]
  $region58: #{mlp_forward.1} parent=0
    _
  %s12 = ssub.s32 1, %s10
  %s13 = scalar_select 0, %s12, %s10
  $region1: #{mlp_forward.1} parent=0
    #allocation2 [shape = 'u8[200704]{0}', space=vmem, size = 0x31000, scoped, tag = 'input window, operand 1, single buffered']
    #allocation3 [shape = 's32[1]{0}', space=sflag, size = 0x4, scoped, tag = 'scoped memory for mlp_forward.1']
    #allocation4 [shape = 's32[1]{0}', space=sflag, size = 0x4, scoped, tag = 'scoped memory for mlp_forward.1']
    #allocation5 [shape = 'u8[32768]{0}', space=vmem, size = 0x8000, scoped, tag = 'input window, operand 5, single buffered']
    #allocation6 [shape = 's32[1]{0}', space=sflag, size = 0x4, scoped, tag = 'scoped memory for mlp_forward.1']
    #allocation7 [shape = 'u8[32768]{0}', space=vmem, size = 0x8000, scoped, tag = 'input window, operand 7, single buffered']
    #allocation8 [shape = 'u8[1024]{0}', space=vmem, size = 0x400, scoped, tag = 'output window, operand 0, single buffered']
    %14 = vsyncpa [#allocation3], 0
    %15 = vsyncpa [#allocation6], 0
    %16 = vsyncpa [#allocation4], 0
    // Predicated region
    $region2: #{mlp_forward.1} parent=1 // pred_check
      _
    $region3: #{mlp_forward.1} parent=1 // pred_check_branch
      %18 = sbr.rel (0) target = $region5
    $region4: #{mlp_forward.1} parent=1 // pred_region
      _
    $region5: #{mlp_forward.1} parent=1 // pred_fallthru
      _
    // Predicated region
    $region6: #{mlp_forward.1} parent=1 // pred_check
      _
    $region7: #{mlp_forward.1} parent=1 // pred_check_branch
      %20 = sbr.rel (0) target = $region9
    $region8: #{mlp_forward.1} parent=1 // pred_region
      %s22 = ssub.s32 6272, 6272
      %23 = vsyncadd [#allocation3], %s22
      %s24 = sshll.u32 [#allocation2], 4
      %s25 = int_to_ptr.vmem [resolvable:$true] %s24
      %30 = dma.hbm_to_vmem [thread:$0]  %s1, 6272, %s25, [#allocation3], 64, 64, 4
    $region9: #{mlp_forward.1} parent=1 // pred_fallthru
      _
    // Predicated region
    $region10: #{mlp_forward.1} parent=1 // pred_check
      _
    $region11: #{mlp_forward.1} parent=1 // pred_check_branch
      %32 = sbr.rel (0) target = $region13
    $region12: #{mlp_forward.1} parent=1 // pred_region
      _
    $region13: #{mlp_forward.1} parent=1 // pred_fallthru
      _
    // Predicated region
    $region14: #{mlp_forward.1} parent=1 // pred_check
      _
    $region15: #{mlp_forward.1} parent=1 // pred_check_branch
      %34 = sbr.rel (0) target = $region17
    $region16: #{mlp_forward.1} parent=1 // pred_region
      _
    $region17: #{mlp_forward.1} parent=1 // pred_fallthru
      _
    // Predicated region
    $region18: #{mlp_forward.1} parent=1 // pred_check
      _
    $region19: #{mlp_forward.1} parent=1 // pred_check_branch
      %36 = sbr.rel (0) target = $region21
    $region20: #{mlp_forward.1} parent=1 // pred_region
      _
    $region21: #{mlp_forward.1} parent=1 // pred_fallthru
      _
    // Predicated region
    $region22: #{mlp_forward.1} parent=1 // pred_check
      _
    $region23: #{mlp_forward.1} parent=1 // pred_check_branch
      %38 = sbr.rel (0) target = $region25
    $region24: #{mlp_forward.1} parent=1 // pred_region
      %s40 = ssub.s32 1024, 1024
      %41 = vsyncadd [#allocation6], %s40
      %s42 = sshll.u32 [#allocation5], 4
      %s43 = int_to_ptr.vmem [resolvable:$true] %s42
      %48 = dma.hbm_to_vmem [thread:$0]  %s5, 1024, %s43, [#allocation6], 64, 64, 4
    $region25: #{mlp_forward.1} parent=1 // pred_fallthru
      _
    // Predicated region
    $region26: #{mlp_forward.1} parent=1 // pred_check
      _
    $region27: #{mlp_forward.1} parent=1 // pred_check_branch
      %50 = sbr.rel (0) target = $region29
    $region28: #{mlp_forward.1} parent=1 // pred_region
      _
    $region29: #{mlp_forward.1} parent=1 // pred_fallthru
      _
    // Predicated region
    $region30: #{mlp_forward.1} parent=1 // pred_check
      _
    $region31: #{mlp_forward.1} parent=1 // pred_check_branch
      %52 = sbr.rel (0) target = $region33
    $region32: #{mlp_forward.1} parent=1 // pred_region
      %s54 = ssub.s32 1024, 1024
      %55 = vsyncadd [#allocation6], %s54
      %s56 = sshll.u32 [#allocation7], 4
      %s57 = int_to_ptr.vmem [resolvable:$true] %s56
      %62 = dma.hbm_to_vmem [thread:$0]  %s7, 1024, %s57, [#allocation6], 64, 64, 4
    $region33: #{mlp_forward.1} parent=1 // pred_fallthru
      _
    // Predicated region
    $region34: #{mlp_forward.1} parent=1 // pred_check
      _
    $region35: #{mlp_forward.1} parent=1 // pred_check_branch
      %64 = sbr.rel (0) target = $region37
    $region36: #{mlp_forward.1} parent=1 // pred_region
      _
    $region37: #{mlp_forward.1} parent=1 // pred_fallthru
      _
    // Predicated region
    $region38: #{mlp_forward.1} parent=1 // pred_check
      _
    $region39: #{mlp_forward.1} parent=1 // pred_check_branch
      %66 = sbr.rel (0) target = $region41
    $region40: #{mlp_forward.1} parent=1 // pred_region
      %67 = dma.done [#allocation3], 6272
    $region41: #{mlp_forward.1} parent=1 // pred_fallthru
      _
    // Predicated region
    $region42: #{mlp_forward.1} parent=1 // pred_check
      _
    $region43: #{mlp_forward.1} parent=1 // pred_check_branch
      %69 = sbr.rel (0) target = $region45
    $region44: #{mlp_forward.1} parent=1 // pred_region
      %70 = dma.done [#allocation6], 1024
    $region45: #{mlp_forward.1} parent=1 // pred_fallthru
      _
    // Predicated region
    $region46: #{mlp_forward.1} parent=1 // pred_check
      _
    $region47: #{mlp_forward.1} parent=1 // pred_check_branch
      %72 = sbr.rel (0) target = $region49
    $region48: #{mlp_forward.1} parent=1 // pred_region
      %73 = dma.done [#allocation6], 1024
    $region49: #{mlp_forward.1} parent=1 // pred_fallthru
      _
    %v75 = vld [vmem:[%s0] sm:$0x7f]
    %v76 = vld [vmem:[#allocation2] sm:$0xf]
    %v77 = vld [vmem:[#allocation2 + $0x4] sm:$0xf]
    %v78 = vld [vmem:[#allocation2 + $0x8] sm:$0xf]
    %v79 = vld [vmem:[#allocation2 + $0xc] sm:$0xf]
    %v80 = vld [vmem:[#allocation2 + $0x10] sm:$0xf]
    %v81 = vld [vmem:[#allocation2 + $0x14] sm:$0xf]
    %v82 = vld [vmem:[#allocation2 + $0x18] sm:$0xf]
    %v83 = vld [vmem:[#allocation2 + $0x1c] sm:$0xf]
    %v84 = vld [vmem:[#allocation2 + $0x20] sm:$0xf]
    %v85 = vld [vmem:[#allocation2 + $0x24] sm:$0xf]
    %v86 = vld [vmem:[#allocation2 + $0x28] sm:$0xf]
    %v87 = vld [vmem:[#allocation2 + $0x2c] sm:$0xf]
    %v88 = vld [vmem:[#allocation2 + $0x30] sm:$0xf]
    %v89 = vld [vmem:[#allocation2 + $0x34] sm:$0xf]
    %v90 = vld [vmem:[#allocation2 + $0x38] sm:$0xf]
    %v91 = vld [vmem:[#allocation2 + $0x3c] sm:$0xf]
    %v92 = vld [vmem:[#allocation2 + $0x40] sm:$0xf]
    %v93 = vld [vmem:[#allocation2 + $0x44] sm:$0xf]
    %v94 = vld [vmem:[#allocation2 + $0x48] sm:$0xf]
    %v95 = vld [vmem:[#allocation2 + $0x4c] sm:$0xf]
    %v96 = vld [vmem:[#allocation2 + $0x50] sm:$0xf]
    %v97 = vld [vmem:[#allocation2 + $0x54] sm:$0xf]
    %v98 = vld [vmem:[#allocation2 + $0x58] sm:$0xf]
    %v99 = vld [vmem:[#allocation2 + $0x5c] sm:$0xf]
    %v100 = vld [vmem:[#allocation2 + $0x60] sm:$0xf]
    %v101 = vld [vmem:[#allocation2 + $0x64] sm:$0xf]
    %v102 = vld [vmem:[#allocation2 + $0x68] sm:$0xf]
    %v103 = vld [vmem:[#allocation2 + $0x6c] sm:$0xf]
    %v104 = vld [vmem:[#allocation2 + $0x70] sm:$0xf]
    %v105 = vld [vmem:[#allocation2 + $0x74] sm:$0xf]
    %v106 = vld [vmem:[#allocation2 + $0x78] sm:$0xf]
    %v107 = vld [vmem:[#allocation2 + $0x7c] sm:$0xf]
    %v108 = vld [vmem:[#allocation2 + $0x80] sm:$0xf]
    %v109 = vld [vmem:[#allocation2 + $0x84] sm:$0xf]
    %v110 = vld [vmem:[#allocation2 + $0x88] sm:$0xf]
    %v111 = vld [vmem:[#allocation2 + $0x8c] sm:$0xf]
    %v112 = vld [vmem:[#allocation2 + $0x90] sm:$0xf]
    %v113 = vld [vmem:[#allocation2 + $0x94] sm:$0xf]
    %v114 = vld [vmem:[#allocation2 + $0x98] sm:$0xf]
    %v115 = vld [vmem:[#allocation2 + $0x9c] sm:$0xf]
    %v116 = vld [vmem:[#allocation2 + $0xa0] sm:$0xf]
    %v117 = vld [vmem:[#allocation2 + $0xa4] sm:$0xf]
    %v118 = vld [vmem:[#allocation2 + $0xa8] sm:$0xf]
    %v119 = vld [vmem:[#allocation2 + $0xac] sm:$0xf]
    %v120 = vld [vmem:[#allocation2 + $0xb0] sm:$0xf]
    %v121 = vld [vmem:[#allocation2 + $0xb4] sm:$0xf]
    %v122 = vld [vmem:[#allocation2 + $0xb8] sm:$0xf]
    %v123 = vld [vmem:[#allocation2 + $0xbc] sm:$0xf]
    %v124 = vld [vmem:[#allocation2 + $0xc0] sm:$0xf]
    %v125 = vld [vmem:[#allocation2 + $0xc4] sm:$0xf]
    %v126 = vld [vmem:[#allocation2 + $0xc8] sm:$0xf]
    %v127 = vld [vmem:[#allocation2 + $0xcc] sm:$0xf]
    %v128 = vld [vmem:[#allocation2 + $0xd0] sm:$0xf]
    %v129 = vld [vmem:[#allocation2 + $0xd4] sm:$0xf]
    %v130 = vld [vmem:[#allocation2 + $0xd8] sm:$0xf]
    %v131 = vld [vmem:[#allocation2 + $0xdc] sm:$0xf]
    %v132 = vld [vmem:[#allocation2 + $0xe0] sm:$0xf]
    %v133 = vld [vmem:[#allocation2 + $0xe4] sm:$0xf]
    %v134 = vld [vmem:[#allocation2 + $0xe8] sm:$0xf]
    %v135 = vld [vmem:[#allocation2 + $0xec] sm:$0xf]
    %v136 = vld [vmem:[#allocation2 + $0xf0] sm:$0xf]
    %v137 = vld [vmem:[#allocation2 + $0xf4] sm:$0xf]
    %v138 = vld [vmem:[#allocation2 + $0xf8] sm:$0xf]
    %v139 = vld [vmem:[#allocation2 + $0xfc] sm:$0xf]
    %v140 = vld [vmem:[#allocation2 + $0x100] sm:$0xf]
    %v141 = vld [vmem:[#allocation2 + $0x104] sm:$0xf]
    %v142 = vld [vmem:[#allocation2 + $0x108] sm:$0xf]
    %v143 = vld [vmem:[#allocation2 + $0x10c] sm:$0xf]
    %v144 = vld [vmem:[#allocation2 + $0x110] sm:$0xf]
    %v145 = vld [vmem:[#allocation2 + $0x114] sm:$0xf]
    %v146 = vld [vmem:[#allocation2 + $0x118] sm:$0xf]
    %v147 = vld [vmem:[#allocation2 + $0x11c] sm:$0xf]
    %v148 = vld [vmem:[#allocation2 + $0x120] sm:$0xf]
    %v149 = vld [vmem:[#allocation2 + $0x124] sm:$0xf]
    %v150 = vld [vmem:[#allocation2 + $0x128] sm:$0xf]
    %v151 = vld [vmem:[#allocation2 + $0x12c] sm:$0xf]
    %v152 = vld [vmem:[#allocation2 + $0x130] sm:$0xf]
    %v153 = vld [vmem:[#allocation2 + $0x134] sm:$0xf]
    %v154 = vld [vmem:[#allocation2 + $0x138] sm:$0xf]
    %v155 = vld [vmem:[#allocation2 + $0x13c] sm:$0xf]
    %v156 = vld [vmem:[#allocation2 + $0x140] sm:$0xf]
    %v157 = vld [vmem:[#allocation2 + $0x144] sm:$0xf]
    %v158 = vld [vmem:[#allocation2 + $0x148] sm:$0xf]
    %v159 = vld [vmem:[#allocation2 + $0x14c] sm:$0xf]
    %v160 = vld [vmem:[#allocation2 + $0x150] sm:$0xf]
    %v161 = vld [vmem:[#allocation2 + $0x154] sm:$0xf]
    %v162 = vld [vmem:[#allocation2 + $0x158] sm:$0xf]
    %v163 = vld [vmem:[#allocation2 + $0x15c] sm:$0xf]
    %v164 = vld [vmem:[#allocation2 + $0x160] sm:$0xf]
    %v165 = vld [vmem:[#allocation2 + $0x164] sm:$0xf]
    %v166 = vld [vmem:[#allocation2 + $0x168] sm:$0xf]
    %v167 = vld [vmem:[#allocation2 + $0x16c] sm:$0xf]
    %v168 = vld [vmem:[#allocation2 + $0x170] sm:$0xf]
    %v169 = vld [vmem:[#allocation2 + $0x174] sm:$0xf]
    %v170 = vld [vmem:[#allocation2 + $0x178] sm:$0xf]
    %v171 = vld [vmem:[#allocation2 + $0x17c] sm:$0xf]
    %v172 = vld [vmem:[#allocation2 + $0x180] sm:$0xf]
    %v173 = vld [vmem:[#allocation2 + $0x184] sm:$0xf]
    %v174 = vld [vmem:[%s2] sm:$0x1]
    %v176 = vlaneseq
    %v177 = vshrl.u32 %v176, 7
    %v178 = vsub.s32 0, %v177
    %v179 = vrot.slane %v174, %v178
    %v182 = vcombine.high %v75, %v75
    %v184 = vunpack.c.l.s4 1966171168
    %v185 = vunpack.c.0.s8 %v184
    %v186 = vlaneseq
    %v187 = vshrl.u32 %v186, 7
    %v188 = vsub.s32 %v185, %v187
    %v189 = vrot.slane %v75, %v188
    %v191 = vunpack.c.l.s4 1966171168
    %v192 = vunpack.c.0.s8 %v191
    %v193 = vlaneseq
    %v194 = vshrl.u32 %v193, 7
    %v195 = vsub.s32 %v192, %v194
    %v196 = vrot.slane %v182, %v195
    %v197 = vcombine.high %v189, %v189
    %v198 = vcombine.high %v196, %v196
    %v200 = vunpack.c.l.s4 1966171168
    %v201 = vunpack.c.0.s8 %v200
    %v202 = vlaneseq
    %v203 = vshrl.u32 %v202, 7
    %v204 = vsub.s32 %v201, %v203
    %v205 = vrot.slane %v189, %v204
    %v207 = vunpack.c.l.s4 1966171168
    %v208 = vunpack.c.0.s8 %v207
    %v209 = vlaneseq
    %v210 = vshrl.u32 %v209, 7
    %v211 = vsub.s32 %v208, %v210
    %v212 = vrot.slane %v196, %v211
    %v214 = vunpack.c.l.s4 1966171168
    %v215 = vunpack.c.0.s8 %v214
    %v216 = vlaneseq
    %v217 = vshrl.u32 %v216, 7
    %v218 = vsub.s32 %v215, %v217
    %v219 = vrot.slane %v197, %v218
    %v221 = vunpack.c.l.s4 1966171168
    %v222 = vunpack.c.0.s8 %v221
    %v223 = vlaneseq
    %v224 = vshrl.u32 %v223, 7
    %v225 = vsub.s32 %v222, %v224
    %v226 = vrot.slane %v198, %v225
    %v227 = vcombine.high %v205, %v205
    %v228 = vcombine.high %v212, %v212
    %v229 = vcombine.high %v219, %v219
    %v334 = vunpack.c.l.b16 %v76
    %v335 = vunpack.c.l.b16 %v77
    %v336 = vunpack.c.l.b16 %v78
    %v337 = vunpack.c.l.b16 %v79
    %v338 = vunpack.c.l.b16 %v80
    %v339 = vunpack.c.l.b16 %v81
    %v340 = vunpack.c.l.b16 %v82
    %v341 = vunpack.c.l.b16 %v83
    %v342 = vunpack.c.l.b16 %v84
    %v343 = vunpack.c.l.b16 %v85
    %v344 = vunpack.c.l.b16 %v86
    %v345 = vunpack.c.l.b16 %v87
    %v346 = vunpack.c.l.b16 %v88
    %v347 = vunpack.c.l.b16 %v89
    %v348 = vunpack.c.l.b16 %v90
    %v349 = vunpack.c.l.b16 %v91
    %v350 = vunpack.c.l.b16 %v92
    %v351 = vunpack.c.l.b16 %v93
    %v352 = vunpack.c.l.b16 %v94
    %v353 = vunpack.c.l.b16 %v95
    %v354 = vunpack.c.l.b16 %v96
    %v355 = vunpack.c.l.b16 %v97
    %v356 = vunpack.c.l.b16 %v98
    %v357 = vunpack.c.l.b16 %v99
    %v358 = vunpack.c.l.b16 %v100
    %v359 = vunpack.c.l.b16 %v101
    %v360 = vunpack.c.l.b16 %v102
    %v361 = vunpack.c.l.b16 %v103
    %v362 = vunpack.c.l.b16 %v104
    %v363 = vunpack.c.l.b16 %v105
    %v364 = vunpack.c.l.b16 %v106
    %v365 = vunpack.c.l.b16 %v107
    %v366 = vunpack.c.l.b16 %v108
    %v367 = vunpack.c.l.b16 %v109
    %v368 = vunpack.c.l.b16 %v110
    %v369 = vunpack.c.l.b16 %v111
    %v370 = vunpack.c.l.b16 %v112
    %v371 = vunpack.c.l.b16 %v113
    %v372 = vunpack.c.l.b16 %v114
    %v373 = vunpack.c.l.b16 %v115
    %v374 = vunpack.c.l.b16 %v116
    %v375 = vunpack.c.l.b16 %v117
    %v376 = vunpack.c.l.b16 %v118
    %v377 = vunpack.c.l.b16 %v119
    %v378 = vunpack.c.l.b16 %v120
    %v379 = vunpack.c.l.b16 %v121
    %v380 = vunpack.c.l.b16 %v122
    %v381 = vunpack.c.l.b16 %v123
    %v382 = vunpack.c.l.b16 %v124
    %v383 = vunpack.c.l.b16 %v125
    %v384 = vunpack.c.l.b16 %v126
    %v385 = vunpack.c.l.b16 %v127
    %v386 = vunpack.c.l.b16 %v128
    %v387 = vunpack.c.l.b16 %v129
    %v388 = vunpack.c.l.b16 %v130
    %v389 = vunpack.c.l.b16 %v131
    %v390 = vunpack.c.l.b16 %v132
    %v391 = vunpack.c.l.b16 %v133
    %v392 = vunpack.c.l.b16 %v134
    %v393 = vunpack.c.l.b16 %v135
    %v394 = vunpack.c.l.b16 %v136
    %v395 = vunpack.c.l.b16 %v137
    %v396 = vunpack.c.l.b16 %v138
    %v397 = vunpack.c.l.b16 %v139
    %v398 = vunpack.c.l.b16 %v140
    %v399 = vunpack.c.l.b16 %v141
    %v400 = vunpack.c.l.b16 %v142
    %v401 = vunpack.c.l.b16 %v143
    %v402 = vunpack.c.l.b16 %v144
    %v403 = vunpack.c.l.b16 %v145
    %v404 = vunpack.c.l.b16 %v146
    %v405 = vunpack.c.l.b16 %v147
    %v406 = vunpack.c.l.b16 %v148
    %v407 = vunpack.c.l.b16 %v149
    %v408 = vunpack.c.l.b16 %v150
    %v409 = vunpack.c.l.b16 %v151
    %v410 = vunpack.c.l.b16 %v152
    %v411 = vunpack.c.l.b16 %v153
    %v412 = vunpack.c.l.b16 %v154
    %v413 = vunpack.c.l.b16 %v155
    %v414 = vunpack.c.l.b16 %v156
    %v415 = vunpack.c.l.b16 %v157
    %v416 = vunpack.c.l.b16 %v158
    %v417 = vunpack.c.l.b16 %v159
    %v418 = vunpack.c.l.b16 %v160
    %v419 = vunpack.c.l.b16 %v161
    %v420 = vunpack.c.l.b16 %v162
    %v421 = vunpack.c.l.b16 %v163
    %v422 = vunpack.c.l.b16 %v164
    %v423 = vunpack.c.l.b16 %v165
    %v424 = vunpack.c.l.b16 %v166
    %v425 = vunpack.c.l.b16 %v167
    %v426 = vunpack.c.l.b16 %v168
    %v427 = vunpack.c.l.b16 %v169
    %v428 = vunpack.c.l.b16 %v170
    %v429 = vunpack.c.l.b16 %v171
    %v430 = vunpack.c.l.b16 %v172
    %v431 = vunpack.c.l.b16 %v173
    %v432 = vpack.c.b16 %v335, %v334
    %v433 = vpack.c.b16 %v337, %v336
    %v434 = vpack.c.b16 %v339, %v338
    %v435 = vpack.c.b16 %v341, %v340
    %v436 = vpack.c.b16 %v343, %v342
    %v437 = vpack.c.b16 %v345, %v344
    %v438 = vpack.c.b16 %v347, %v346
    %v439 = vpack.c.b16 %v349, %v348
    %v440 = vpack.c.b16 %v351, %v350
    %v441 = vpack.c.b16 %v353, %v352
    %v442 = vpack.c.b16 %v355, %v354
    %v443 = vpack.c.b16 %v357, %v356
    %v444 = vpack.c.b16 %v359, %v358
    %v445 = vpack.c.b16 %v361, %v360
    %v446 = vpack.c.b16 %v363, %v362
    %v447 = vpack.c.b16 %v365, %v364
    %v448 = vpack.c.b16 %v367, %v366
    %v449 = vpack.c.b16 %v369, %v368
    %v450 = vpack.c.b16 %v371, %v370
    %v451 = vpack.c.b16 %v373, %v372
    %v452 = vpack.c.b16 %v375, %v374
    %v453 = vpack.c.b16 %v377, %v376
    %v454 = vpack.c.b16 %v379, %v378
    %v455 = vpack.c.b16 %v381, %v380
    %v456 = vpack.c.b16 %v383, %v382
    %v457 = vpack.c.b16 %v385, %v384
    %v458 = vpack.c.b16 %v387, %v386
    %v459 = vpack.c.b16 %v389, %v388
    %v460 = vpack.c.b16 %v391, %v390
    %v461 = vpack.c.b16 %v393, %v392
    %v462 = vpack.c.b16 %v395, %v394
    %v463 = vpack.c.b16 %v397, %v396
    %v464 = vpack.c.b16 %v399, %v398
    %v465 = vpack.c.b16 %v401, %v400
    %v466 = vpack.c.b16 %v403, %v402
    %v467 = vpack.c.b16 %v405, %v404
    %v468 = vpack.c.b16 %v407, %v406
    %v469 = vpack.c.b16 %v409, %v408
    %v470 = vpack.c.b16 %v411, %v410
    %v471 = vpack.c.b16 %v413, %v412
    %v472 = vpack.c.b16 %v415, %v414
    %v473 = vpack.c.b16 %v417, %v416
    %v474 = vpack.c.b16 %v419, %v418
    %v475 = vpack.c.b16 %v421, %v420
    %v476 = vpack.c.b16 %v423, %v422
    %v477 = vpack.c.b16 %v425, %v424
    %v478 = vpack.c.b16 %v427, %v426
    %v479 = vpack.c.b16 %v429, %v428
    %v480 = vpack.c.b16 %v431, %v430
    %vm530 = vcmask 130048
    %v532 = vsel %vm530, %v228, 0
    %534 = vmatprep.subr.bf16.mxu0 0
    %535 = vmatpush1.bf16.msra.mxu0 %v432
    %536 = vmatprep.subr.bf16.mxu0 0
    %537 = vmatpush1.bf16.msra.mxu0 %v433
    %538 = vmatprep.subr.bf16.mxu0 0
    %539 = vmatpush1.bf16.msra.mxu0 %v434
    %540 = vmatprep.subr.bf16.mxu0 0
    %541 = vmatpush1.bf16.msra.mxu0 %v435
    %542 = vmatprep.subr.bf16.mxu0 0
    %543 = vmatpush1.bf16.msra.mxu0 %v436
    %544 = vmatprep.subr.bf16.mxu0 0
    %545 = vmatpush1.bf16.msra.mxu0 %v437
    %546 = vmatprep.subr.bf16.mxu0 0
    %547 = vmatpush1.bf16.msra.mxu0 %v438
    %548 = vmatprep.subr.bf16.mxu0 0
    %549 = vmatpush1.bf16.msra.mxu0 %v439
    %550 = vmatprep.subr.bf16.mxu0 0
    %551 = vmatpush1.bf16.msra.mxu0 %v440
    %552 = vmatprep.subr.bf16.mxu0 0
    %553 = vmatpush1.bf16.msra.mxu0 %v441
    %554 = vmatprep.subr.bf16.mxu0 0
    %555 = vmatpush1.bf16.msra.mxu0 %v442
    %556 = vmatprep.subr.bf16.mxu0 0
    %557 = vmatpush1.bf16.msra.mxu0 %v443
    %558 = vmatprep.subr.bf16.mxu0 0
    %559 = vmatpush1.bf16.msra.mxu0 %v444
    %560 = vmatprep.subr.bf16.mxu0 0
    %561 = vmatpush1.bf16.msra.mxu0 %v445
    %562 = vmatprep.subr.bf16.mxu0 0
    %563 = vmatpush1.bf16.msra.mxu0 %v446
    %564 = vmatprep.subr.bf16.mxu0 0
    %565 = vmatpush1.bf16.msra.mxu0 %v447
    %566 = vmatprep.mubr.bf16.mxu0 %v219
    %567 = vmatmul.mubr.bf16.gmra.mrb[0].mxu0 %v205
    %v568 = vpop.f32.mrb[0].mxu0
    %v569 = vadd.f32 %v179, %v568
    %v570 = vpop.f32.mrb[0].mxu0
    %v571 = vpop.f32.mrb[0].mxu0
    %v572 = vpop.f32.mrb[0].mxu0
    %573 = vdwg.mxu0
    %574 = vmatprep.subr.bf16.mxu0 0
    %575 = vmatpush1.bf16.msra.mxu0 %v448
    %576 = vmatprep.subr.bf16.mxu0 0
    %577 = vmatpush1.bf16.msra.mxu0 %v449
    %578 = vmatprep.subr.bf16.mxu0 0
    %579 = vmatpush1.bf16.msra.mxu0 %v450
    %580 = vmatprep.subr.bf16.mxu0 0
    %581 = vmatpush1.bf16.msra.mxu0 %v451
    %582 = vmatprep.subr.bf16.mxu0 0
    %583 = vmatpush1.bf16.msra.mxu0 %v452
    %584 = vmatprep.subr.bf16.mxu0 0
    %585 = vmatpush1.bf16.msra.mxu0 %v453
    %586 = vmatprep.subr.bf16.mxu0 0
    %587 = vmatpush1.bf16.msra.mxu0 %v454
    %588 = vmatprep.subr.bf16.mxu0 0
    %589 = vmatpush1.bf16.msra.mxu0 %v455
    %590 = vmatprep.subr.bf16.mxu0 0
    %591 = vmatpush1.bf16.msra.mxu0 %v456
    %592 = vmatprep.subr.bf16.mxu0 0
    %593 = vmatpush1.bf16.msra.mxu0 %v457
    %594 = vmatprep.subr.bf16.mxu0 0
    %595 = vmatpush1.bf16.msra.mxu0 %v458
    %596 = vmatprep.subr.bf16.mxu0 0
    %597 = vmatpush1.bf16.msra.mxu0 %v459
    %598 = vmatprep.subr.bf16.mxu0 0
    %599 = vmatpush1.bf16.msra.mxu0 %v460
    %600 = vmatprep.subr.bf16.mxu0 0
    %601 = vmatpush1.bf16.msra.mxu0 %v461
    %602 = vmatprep.subr.bf16.mxu0 0
    %603 = vmatpush1.bf16.msra.mxu0 %v462
    %604 = vmatprep.subr.bf16.mxu0 0
    %605 = vmatpush1.bf16.msra.mxu0 %v463
    %606 = vmatprep.mubr.bf16.mxu0 %v229
    %607 = vmatmul.mubr.bf16.gmra.mrb[0].mxu0 %v227
    %v608 = vpop.f32.mrb[0].mxu0
    %v609 = vadd.f32 %v569, %v608
    %v610 = vpop.f32.mrb[0].mxu0
    %v611 = vpop.f32.mrb[0].mxu0
    %v612 = vpop.f32.mrb[0].mxu0
    %613 = vdwg.mxu0
    %614 = vmatprep.subr.bf16.mxu0 0
    %615 = vmatpush1.bf16.msra.mxu0 %v464
    %616 = vmatprep.subr.bf16.mxu0 0
    %617 = vmatpush1.bf16.msra.mxu0 %v465
    %618 = vmatprep.subr.bf16.mxu0 0
    %619 = vmatpush1.bf16.msra.mxu0 %v466
    %620 = vmatprep.subr.bf16.mxu0 0
    %621 = vmatpush1.bf16.msra.mxu0 %v467
    %622 = vmatprep.subr.bf16.mxu0 0
    %623 = vmatpush1.bf16.msra.mxu0 %v468
    %624 = vmatprep.subr.bf16.mxu0 0
    %625 = vmatpush1.bf16.msra.mxu0 %v469
    %626 = vmatprep.subr.bf16.mxu0 0
    %627 = vmatpush1.bf16.msra.mxu0 %v470
    %628 = vmatprep.subr.bf16.mxu0 0
    %629 = vmatpush1.bf16.msra.mxu0 %v471
    %630 = vmatprep.subr.bf16.mxu0 0
    %631 = vmatpush1.bf16.msra.mxu0 %v472
    %632 = vmatprep.subr.bf16.mxu0 0
    %633 = vmatpush1.bf16.msra.mxu0 %v473
    %634 = vmatprep.subr.bf16.mxu0 0
    %635 = vmatpush1.bf16.msra.mxu0 %v474
    %636 = vmatprep.subr.bf16.mxu0 0
    %637 = vmatpush1.bf16.msra.mxu0 %v475
    %638 = vmatprep.subr.bf16.mxu0 0
    %639 = vmatpush1.bf16.msra.mxu0 %v476
    %640 = vmatprep.subr.bf16.mxu0 0
    %641 = vmatpush1.bf16.msra.mxu0 %v477
    %642 = vmatprep.subr.bf16.mxu0 0
    %643 = vmatpush1.bf16.msra.mxu0 %v478
    %644 = vmatprep.subr.bf16.mxu0 0
    %645 = vmatpush1.bf16.msra.mxu0 %v479
    %646 = vmatprep.mubr.bf16.mxu0 %v226
    %647 = vmatmul.mubr.bf16.gmra.mrb[0].mxu0 %v212
    %v648 = vpop.f32.mrb[0].mxu0
    %v649 = vadd.f32 %v609, %v648
    %v650 = vpop.f32.mrb[0].mxu0
    %v651 = vpop.f32.mrb[0].mxu0
    %v652 = vpop.f32.mrb[0].mxu0
    %653 = vdwg.mxu0
    %654 = vmatprep.subr.bf16.mxu0 0
    %655 = vmatpush1.bf16.msra.mxu0 %v480
    %656 = vmatprep.subr.bf16.mxu0 0
    %657 = vmatpush1.bf16.msra.mxu0 0
    %658 = vmatprep.subr.bf16.mxu0 0
    %659 = vmatpush1.bf16.msra.mxu0 0
    %660 = vmatprep.subr.bf16.mxu0 0
    %661 = vmatpush1.bf16.msra.mxu0 0
    %662 = vmatprep.subr.bf16.mxu0 0
    %663 = vmatpush1.bf16.msra.mxu0 0
    %664 = vmatprep.subr.bf16.mxu0 0
    %665 = vmatpush1.bf16.msra.mxu0 0
    %666 = vmatprep.subr.bf16.mxu0 0
    %667 = vmatpush1.bf16.msra.mxu0 0
    %668 = vmatprep.subr.bf16.mxu0 0
    %669 = vmatpush1.bf16.msra.mxu0 0
    %670 = vmatprep.subr.bf16.mxu0 0
    %671 = vmatpush1.bf16.msra.mxu0 0
    %672 = vmatprep.subr.bf16.mxu0 0
    %673 = vmatpush1.bf16.msra.mxu0 0
    %674 = vmatprep.subr.bf16.mxu0 0
    %675 = vmatpush1.bf16.msra.mxu0 0
    %676 = vmatprep.subr.bf16.mxu0 0
    %677 = vmatpush1.bf16.msra.mxu0 0
    %678 = vmatprep.subr.bf16.mxu0 0
    %679 = vmatpush1.bf16.msra.mxu0 0
    %680 = vmatprep.subr.bf16.mxu0 0
    %681 = vmatpush1.bf16.msra.mxu0 0
    %682 = vmatprep.subr.bf16.mxu0 0
    %683 = vmatpush1.bf16.msra.mxu0 0
    %684 = vmatprep.subr.bf16.mxu0 0
    %685 = vmatpush1.bf16.msra.mxu0 0
    %686 = vmatprep.mubr.bf16.mxu0 0
    %687 = vmatmul.mubr.bf16.gmra.mrb[0].mxu0 %v532
    %v688 = vpop.f32.mrb[0].mxu0
    %v689 = vadd.f32 %v649, %v688
    %v690 = vpop.f32.mrb[0].mxu0
    %v691 = vpop.f32.mrb[0].mxu0
    %v692 = vpop.f32.mrb[0].mxu0
    %693 = vdwg.mxu0
    %v694 = vmax.f32 %v689, 0.0
    %v695 = vpack.c.bf16 %v694, %v694
    %v696 = vld [vmem:[%s3] sm:$0xf]
    %v697 = vld [vmem:[%s3 + $0x4] sm:$0xf]
    %v698 = vld [vmem:[%s3 + $0x8] sm:$0xf]
    %v699 = vld [vmem:[%s3 + $0xc] sm:$0xf]
    %v700 = vld [vmem:[%s3 + $0x10] sm:$0xf]
    %v701 = vld [vmem:[%s3 + $0x14] sm:$0xf]
    %v702 = vld [vmem:[%s3 + $0x18] sm:$0xf]
    %v703 = vld [vmem:[%s3 + $0x1c] sm:$0xf]
    %v704 = vld [vmem:[%s3 + $0x20] sm:$0xf]
    %v705 = vld [vmem:[%s3 + $0x24] sm:$0xf]
    %v706 = vld [vmem:[%s3 + $0x28] sm:$0xf]
    %v707 = vld [vmem:[%s3 + $0x2c] sm:$0xf]
    %v708 = vld [vmem:[%s3 + $0x30] sm:$0xf]
    %v709 = vld [vmem:[%s3 + $0x34] sm:$0xf]
    %v710 = vld [vmem:[%s3 + $0x38] sm:$0xf]
    %v711 = vld [vmem:[%s3 + $0x3c] sm:$0xf]
    %v712 = vld [vmem:[%s4] sm:$0x1]
    %v714 = vlaneseq
    %v715 = vshrl.u32 %v714, 7
    %v716 = vsub.s32 0, %v715
    %v717 = vrot.slane %v712, %v716
    %v735 = vunpack.c.l.b16 %v696
    %v736 = vunpack.c.l.b16 %v697
    %v737 = vunpack.c.l.b16 %v698
    %v738 = vunpack.c.l.b16 %v699
    %v739 = vunpack.c.l.b16 %v700
    %v740 = vunpack.c.l.b16 %v701
    %v741 = vunpack.c.l.b16 %v702
    %v742 = vunpack.c.l.b16 %v703
    %v743 = vunpack.c.l.b16 %v704
    %v744 = vunpack.c.l.b16 %v705
    %v745 = vunpack.c.l.b16 %v706
    %v746 = vunpack.c.l.b16 %v707
    %v747 = vunpack.c.l.b16 %v708
    %v748 = vunpack.c.l.b16 %v709
    %v749 = vunpack.c.l.b16 %v710
    %v750 = vunpack.c.l.b16 %v711
    %v751 = vpack.c.b16 %v736, %v735
    %v752 = vpack.c.b16 %v738, %v737
    %v753 = vpack.c.b16 %v740, %v739
    %v754 = vpack.c.b16 %v742, %v741
    %v755 = vpack.c.b16 %v744, %v743
    %v756 = vpack.c.b16 %v746, %v745
    %v757 = vpack.c.b16 %v748, %v747
    %v758 = vpack.c.b16 %v750, %v749
    %767 = vmatprep.subr.bf16.mxu0 0
    %768 = vmatpush1.bf16.msra.mxu0 %v751
    %769 = vmatprep.subr.bf16.mxu0 0
    %770 = vmatpush1.bf16.msra.mxu0 %v752
    %771 = vmatprep.subr.bf16.mxu0 0
    %772 = vmatpush1.bf16.msra.mxu0 %v753
    %773 = vmatprep.subr.bf16.mxu0 0
    %774 = vmatpush1.bf16.msra.mxu0 %v754
    %775 = vmatprep.subr.bf16.mxu0 0
    %776 = vmatpush1.bf16.msra.mxu0 %v755
    %777 = vmatprep.subr.bf16.mxu0 0
    %778 = vmatpush1.bf16.msra.mxu0 %v756
    %779 = vmatprep.subr.bf16.mxu0 0
    %780 = vmatpush1.bf16.msra.mxu0 %v757
    %781 = vmatprep.subr.bf16.mxu0 0
    %782 = vmatpush1.bf16.msra.mxu0 %v758
    %783 = vmatprep.subr.bf16.mxu0 0
    %784 = vmatpush1.bf16.msra.mxu0 0
    %785 = vmatprep.subr.bf16.mxu0 0
    %786 = vmatpush1.bf16.msra.mxu0 0
    %787 = vmatprep.subr.bf16.mxu0 0
    %788 = vmatpush1.bf16.msra.mxu0 0
    %789 = vmatprep.subr.bf16.mxu0 0
    %790 = vmatpush1.bf16.msra.mxu0 0
    %791 = vmatprep.subr.bf16.mxu0 0
    %792 = vmatpush1.bf16.msra.mxu0 0
    %793 = vmatprep.subr.bf16.mxu0 0
    %794 = vmatpush1.bf16.msra.mxu0 0
    %795 = vmatprep.subr.bf16.mxu0 0
    %796 = vmatpush1.bf16.msra.mxu0 0
    %797 = vmatprep.subr.bf16.mxu0 0
    %798 = vmatpush1.bf16.msra.mxu0 0
    %799 = vmatprep.mubr.bf16.mxu0 0
    %800 = vmatmul.mubr.bf16.gmra.mrb[0].mxu0 %v695
    %v801 = vpop.f32.mrb[0].mxu0
    %v802 = vadd.f32 %v717, %v801
    %v803 = vpop.f32.mrb[0].mxu0
    %v804 = vpop.f32.mrb[0].mxu0
    %v805 = vpop.f32.mrb[0].mxu0
    %806 = vdwg.mxu0
    %v807 = vmax.f32 %v802, 0.0
    %v808 = vpack.c.bf16 %v807, %v807
    %v809 = vld [vmem:[#allocation5] sm:$0xf]
    %v810 = vld [vmem:[#allocation5 + $0x4] sm:$0xf]
    %v811 = vld [vmem:[#allocation5 + $0x8] sm:$0xf]
    %v812 = vld [vmem:[#allocation5 + $0xc] sm:$0xf]
    %v813 = vld [vmem:[#allocation5 + $0x10] sm:$0xf]
    %v814 = vld [vmem:[#allocation5 + $0x14] sm:$0xf]
    %v815 = vld [vmem:[#allocation5 + $0x18] sm:$0xf]
    %v816 = vld [vmem:[#allocation5 + $0x1c] sm:$0xf]
    %v817 = vld [vmem:[#allocation5 + $0x20] sm:$0xf]
    %v818 = vld [vmem:[#allocation5 + $0x24] sm:$0xf]
    %v819 = vld [vmem:[#allocation5 + $0x28] sm:$0xf]
    %v820 = vld [vmem:[#allocation5 + $0x2c] sm:$0xf]
    %v821 = vld [vmem:[#allocation5 + $0x30] sm:$0xf]
    %v822 = vld [vmem:[#allocation5 + $0x34] sm:$0xf]
    %v823 = vld [vmem:[#allocation5 + $0x38] sm:$0xf]
    %v824 = vld [vmem:[#allocation5 + $0x3c] sm:$0xf]
    %v825 = vld [vmem:[%s6] sm:$0x1]
    %v827 = vlaneseq
    %v828 = vshrl.u32 %v827, 7
    %v829 = vsub.s32 0, %v828
    %v830 = vrot.slane %v825, %v829
    %v848 = vunpack.c.l.b16 %v809
    %v849 = vunpack.c.l.b16 %v810
    %v850 = vunpack.c.l.b16 %v811
    %v851 = vunpack.c.l.b16 %v812
    %v852 = vunpack.c.l.b16 %v813
    %v853 = vunpack.c.l.b16 %v814
    %v854 = vunpack.c.l.b16 %v815
    %v855 = vunpack.c.l.b16 %v816
    %v856 = vunpack.c.l.b16 %v817
    %v857 = vunpack.c.l.b16 %v818
    %v858 = vunpack.c.l.b16 %v819
    %v859 = vunpack.c.l.b16 %v820
    %v860 = vunpack.c.l.b16 %v821
    %v861 = vunpack.c.l.b16 %v822
    %v862 = vunpack.c.l.b16 %v823
    %v863 = vunpack.c.l.b16 %v824
    %v864 = vpack.c.b16 %v849, %v848
    %v865 = vpack.c.b16 %v851, %v850
    %v866 = vpack.c.b16 %v853, %v852
    %v867 = vpack.c.b16 %v855, %v854
    %v868 = vpack.c.b16 %v857, %v856
    %v869 = vpack.c.b16 %v859, %v858
    %v870 = vpack.c.b16 %v861, %v860
    %v871 = vpack.c.b16 %v863, %v862
    %880 = vmatprep.subr.bf16.mxu0 0
    %881 = vmatpush1.bf16.msra.mxu0 %v864
    %882 = vmatprep.subr.bf16.mxu0 0
    %883 = vmatpush1.bf16.msra.mxu0 %v865
    %884 = vmatprep.subr.bf16.mxu0 0
    %885 = vmatpush1.bf16.msra.mxu0 %v866
    %886 = vmatprep.subr.bf16.mxu0 0
    %887 = vmatpush1.bf16.msra.mxu0 %v867
    %888 = vmatprep.subr.bf16.mxu0 0
    %889 = vmatpush1.bf16.msra.mxu0 %v868
    %890 = vmatprep.subr.bf16.mxu0 0
    %891 = vmatpush1.bf16.msra.mxu0 %v869
    %892 = vmatprep.subr.bf16.mxu0 0
    %893 = vmatpush1.bf16.msra.mxu0 %v870
    %894 = vmatprep.subr.bf16.mxu0 0
    %895 = vmatpush1.bf16.msra.mxu0 %v871
    %896 = vmatprep.subr.bf16.mxu0 0
    %897 = vmatpush1.bf16.msra.mxu0 0
    %898 = vmatprep.subr.bf16.mxu0 0
    %899 = vmatpush1.bf16.msra.mxu0 0
    %900 = vmatprep.subr.bf16.mxu0 0
    %901 = vmatpush1.bf16.msra.mxu0 0
    %902 = vmatprep.subr.bf16.mxu0 0
    %903 = vmatpush1.bf16.msra.mxu0 0
    %904 = vmatprep.subr.bf16.mxu0 0
    %905 = vmatpush1.bf16.msra.mxu0 0
    %906 = vmatprep.subr.bf16.mxu0 0
    %907 = vmatpush1.bf16.msra.mxu0 0
    %908 = vmatprep.subr.bf16.mxu0 0
    %909 = vmatpush1.bf16.msra.mxu0 0
    %910 = vmatprep.subr.bf16.mxu0 0
    %911 = vmatpush1.bf16.msra.mxu0 0
    %912 = vmatprep.mubr.bf16.mxu0 0
    %913 = vmatmul.mubr.bf16.gmra.mrb[0].mxu0 %v808
    %v914 = vpop.f32.mrb[0].mxu0
    %v915 = vadd.f32 %v830, %v914
    %v916 = vpop.f32.mrb[0].mxu0
    %v917 = vpop.f32.mrb[0].mxu0
    %v918 = vpop.f32.mrb[0].mxu0
    %919 = vdwg.mxu0
    %v920 = vmax.f32 %v915, 0.0
    %v921 = vpack.c.bf16 %v920, %v920
    %v922 = vld [vmem:[#allocation7] sm:$0xf]
    %v923 = vld [vmem:[#allocation7 + $0x4] sm:$0xf]
    %v924 = vld [vmem:[#allocation7 + $0x8] sm:$0xf]
    %v925 = vld [vmem:[#allocation7 + $0xc] sm:$0xf]
    %v926 = vld [vmem:[#allocation7 + $0x10] sm:$0xf]
    %v927 = vld [vmem:[#allocation7 + $0x14] sm:$0xf]
    %v928 = vld [vmem:[#allocation7 + $0x18] sm:$0xf]
    %v929 = vld [vmem:[#allocation7 + $0x1c] sm:$0xf]
    %v930 = vld [vmem:[#allocation7 + $0x20] sm:$0xf]
    %v931 = vld [vmem:[#allocation7 + $0x24] sm:$0xf]
    %v932 = vld [vmem:[#allocation7 + $0x28] sm:$0xf]
    %v933 = vld [vmem:[#allocation7 + $0x2c] sm:$0xf]
    %v934 = vld [vmem:[#allocation7 + $0x30] sm:$0xf]
    %v935 = vld [vmem:[#allocation7 + $0x34] sm:$0xf]
    %v936 = vld [vmem:[#allocation7 + $0x38] sm:$0xf]
    %v937 = vld [vmem:[#allocation7 + $0x3c] sm:$0xf]
    %v938 = vld [vmem:[%s8] sm:$0x1]
    %v940 = vlaneseq
    %v941 = vshrl.u32 %v940, 7
    %v942 = vsub.s32 0, %v941
    %v943 = vrot.slane %v938, %v942
    %v961 = vunpack.c.l.b16 %v922
    %v962 = vunpack.c.l.b16 %v923
    %v963 = vunpack.c.l.b16 %v924
    %v964 = vunpack.c.l.b16 %v925
    %v965 = vunpack.c.l.b16 %v926
    %v966 = vunpack.c.l.b16 %v927
    %v967 = vunpack.c.l.b16 %v928
    %v968 = vunpack.c.l.b16 %v929
    %v969 = vunpack.c.l.b16 %v930
    %v970 = vunpack.c.l.b16 %v931
    %v971 = vunpack.c.l.b16 %v932
    %v972 = vunpack.c.l.b16 %v933
    %v973 = vunpack.c.l.b16 %v934
    %v974 = vunpack.c.l.b16 %v935
    %v975 = vunpack.c.l.b16 %v936
    %v976 = vunpack.c.l.b16 %v937
    %v977 = vpack.c.b16 %v962, %v961
    %v978 = vpack.c.b16 %v964, %v963
    %v979 = vpack.c.b16 %v966, %v965
    %v980 = vpack.c.b16 %v968, %v967
    %v981 = vpack.c.b16 %v970, %v969
    %v982 = vpack.c.b16 %v972, %v971
    %v983 = vpack.c.b16 %v974, %v973
    %v984 = vpack.c.b16 %v976, %v975
    %993 = vmatprep.subr.bf16.mxu0 0
    %994 = vmatpush1.bf16.msra.mxu0 %v977
    %995 = vmatprep.subr.bf16.mxu0 0
    %996 = vmatpush1.bf16.msra.mxu0 %v978
    %997 = vmatprep.subr.bf16.mxu0 0
    %998 = vmatpush1.bf16.msra.mxu0 %v979
    %999 = vmatprep.subr.bf16.mxu0 0
    %1000 = vmatpush1.bf16.msra.mxu0 %v980
    %1001 = vmatprep.subr.bf16.mxu0 0
    %1002 = vmatpush1.bf16.msra.mxu0 %v981
    %1003 = vmatprep.subr.bf16.mxu0 0
    %1004 = vmatpush1.bf16.msra.mxu0 %v982
    %1005 = vmatprep.subr.bf16.mxu0 0
    %1006 = vmatpush1.bf16.msra.mxu0 %v983
    %1007 = vmatprep.subr.bf16.mxu0 0
    %1008 = vmatpush1.bf16.msra.mxu0 %v984
    %1009 = vmatprep.subr.bf16.mxu0 0
    %1010 = vmatpush1.bf16.msra.mxu0 0
    %1011 = vmatprep.subr.bf16.mxu0 0
    %1012 = vmatpush1.bf16.msra.mxu0 0
    %1013 = vmatprep.subr.bf16.mxu0 0
    %1014 = vmatpush1.bf16.msra.mxu0 0
    %1015 = vmatprep.subr.bf16.mxu0 0
    %1016 = vmatpush1.bf16.msra.mxu0 0
    %1017 = vmatprep.subr.bf16.mxu0 0
    %1018 = vmatpush1.bf16.msra.mxu0 0
    %1019 = vmatprep.subr.bf16.mxu0 0
    %1020 = vmatpush1.bf16.msra.mxu0 0
    %1021 = vmatprep.subr.bf16.mxu0 0
    %1022 = vmatpush1.bf16.msra.mxu0 0
    %1023 = vmatprep.subr.bf16.mxu0 0
    %1024 = vmatpush1.bf16.msra.mxu0 0
    %1025 = vmatprep.mubr.bf16.mxu0 0
    %1026 = vmatmul.mubr.bf16.gmra.mrb[0].mxu0 %v921
    %v1027 = vpop.f32.mrb[0].mxu0
    %v1028 = vadd.f32 %v943, %v1027
    %v1029 = vpop.f32.mrb[0].mxu0
    %v1030 = vpop.f32.mrb[0].mxu0
    %v1031 = vpop.f32.mrb[0].mxu0
    %1032 = vdwg.mxu0
    %vm1033 = vcmask 1041408
    %v1034 = vsel %vm1033, %v1028, -inf
    %1035 = vmax.xlane.f32.xlu0 %v1034
    %v1036 = vpop.xlane.xlu0 %1035
    %v1037 = vsub.f32 %v1028, %v1036
    %v1038 = vmul.f32 %v1037, 1.442695
    %v1039 = vpow.pop %v1038
    %v1040 = vsel %vm1033, %v1039, 0.0
    %1041 = vadd.xlane.f32.xlu0 %v1040
    %v1042 = vpop.xlane.xlu0 %1041
    %v1043 = vlog2.pop %v1042
    %v1044 = vmul.f32 %v1043, 0.6931472
    %v1045 = vsub.f32 %v1037, %v1044
    %1046 = vst [vmem:[#allocation8] sm:$0x3] %v1045
    // Predicated region
    $region50: #{mlp_forward.1} parent=1 // pred_check
      _
    $region51: #{mlp_forward.1} parent=1 // pred_check_branch
      %1048 = sbr.rel (0) target = $region53
    $region52: #{mlp_forward.1} parent=1 // pred_region
      %s1050 = ssub.s32 32, 32
      %1051 = vsyncadd [#allocation4], %s1050
      %s1053 = sshll.u32 [#allocation8], 4
      %s1054 = int_to_ptr.vmem [resolvable:$true] %s1053
      %1056 = dma.vmem_to_hbm [thread:$0]  %s1054, 32, %s9, [#allocation4]
    $region53: #{mlp_forward.1} parent=1 // pred_fallthru
      _
    // Predicated region
    $region54: #{mlp_forward.1} parent=1 // pred_check
      _
    $region55: #{mlp_forward.1} parent=1 // pred_check_branch
      %1058 = sbr.rel (0) target = $region57
    $region56: #{mlp_forward.1} parent=1 // pred_region
      %1059 = dma.done [#allocation4], 32
    $region57: #{mlp_forward.1} parent=1 // pred_fallthru
      _
    %1060 = vsyncpa [#allocation3], 1
    %1061 = vsyncpa [#allocation6], 1
    %1062 = vsyncpa [#allocation4], 1

</llo_original>
